<compile_context>
chip_gen: v5e
topology: v5e:2x2
jax: 0.10.0
libtpu: 0.0.40
codegen_flags: <defaults>
</compile_context>

<pallas_src>
import math

import jax
import jax.numpy as jnp
from jax.experimental import pallas as pl
from jax.experimental.pallas import tpu as pltpu


_OUT_LANES = 128  # lane-dense output width (last dim multiple of 128)


# ---------------------------------------------------------------------------
# Fused forward kernel (one grid step == one feat_mask candidate).
#   mask_ref : VMEM (1, N, F)   feat_mask candidate (pre-sigmoid)
#   feat_ref : VMEM (N, F)
#   a_ref    : VMEM (N, N)      row-normalized weighted adjacency
#   w1_ref   : VMEM (F, H)
#   p_ref    : VMEM (N, H)      precomputed P = A @ feat @ W1
#   at_ref   : VMEM (1, N)      precomputed target row A[target_node]
#   w2_ref   : VMEM (H, C)
#   out_ref  : VMEM (1, 2, 128) row 0 = softmax(pred1) padded, row 1 = pred2
# ---------------------------------------------------------------------------
def _fused_forward_kernel(mask_ref, feat_ref, a_ref, w1_ref, p_ref, at_ref,
                          w2_ref, out_ref):
    c = w2_ref.shape[1]

    feat = feat_ref[...]

    # --- feature mask (VPU); cf branch handled by linearity below ---
    masked = feat * jax.nn.sigmoid(mask_ref[0])                          # (n, f)

    # --- layer 1: only the masked branch hits the MXU ---
    am = jnp.dot(a_ref[...], masked, preferred_element_type=jnp.float32)  # (n, f)
    pre_m = jnp.dot(am, w1_ref[...], preferred_element_type=jnp.float32)  # (n, h)
    pre_cf = p_ref[...] - pre_m          # A @ (feat - masked) @ W1 via linearity
    h_m = jnp.maximum(pre_m, 0.0)
    h_cf = jnp.maximum(pre_cf, 0.0)

    # --- layer 2: target node's row only (precomputed (1, n) adjacency row) ---
    a_t = at_ref[...]                                                     # (1, n)
    th1 = jnp.dot(a_t, h_m, preferred_element_type=jnp.float32)           # (1, h)
    th2 = jnp.dot(a_t, h_cf, preferred_element_type=jnp.float32)          # (1, h)
    th = jnp.concatenate([th1, th2], axis=0)                              # (2, h)
    logits = jnp.dot(th, w2_ref[...], preferred_element_type=jnp.float32)  # (2, c)

    # --- softmax in-kernel (exact normalization) ---
    mx = jnp.max(logits, axis=1, keepdims=True)
    e = jnp.exp(logits - mx)
    s = jnp.sum(e, axis=1, keepdims=True)
    p = e / s                                                              # (2, c)

    # lane-dense padded writeback
    out_ref[0] = jnp.concatenate(
        [p, jnp.zeros((2, _OUT_LANES - c), jnp.float32)], axis=1)


@jax.jit
def fused_forward_batched(adj_w, feat, p_const, a_t, w1, w2, feat_masks):
    """One pallas_call over a batch of feat_mask candidates.

    feat_masks: (B, N, F).  Returns (B, 2, C): [:, 0] = pred1, [:, 1] = pred2.
    """
    b, n, f = feat_masks.shape
    h = w1.shape[1]
    c = w2.shape[1]
    out = pl.pallas_call(
        _fused_forward_kernel,
        out_shape=jax.ShapeDtypeStruct((b, 2, _OUT_LANES), jnp.float32),
        grid=(b,),
        in_specs=[
            pl.BlockSpec((1, n, f), lambda i: (i, 0, 0)),   # feat_mask batch
            pl.BlockSpec((n, f), lambda i: (0, 0)),          # feat
            pl.BlockSpec((n, n), lambda i: (0, 0)),          # adj_w
            pl.BlockSpec((f, h), lambda i: (0, 0)),          # w1
            pl.BlockSpec((n, h), lambda i: (0, 0)),          # P = A @ feat @ W1
            pl.BlockSpec((1, n), lambda i: (0, 0)),          # a_t (target row)
            pl.BlockSpec((h, c), lambda i: (0, 0)),          # w2
        ],
        out_specs=pl.BlockSpec((1, 2, _OUT_LANES), lambda i: (i, 0, 0)),
        compiler_params=pltpu.CompilerParams(
            dimension_semantics=("parallel",)),
    )(feat_masks, feat, adj_w, w1, p_const, a_t, w2)
    return out[:, :, :c]


# ---------------------------------------------------------------------------
# Standalone mask kernel (get_masked_feat method).
# ---------------------------------------------------------------------------
def _mask_kernel(feat_ref, mask_ref, masked_ref):
    masked_ref[...] = feat_ref[...] * jax.nn.sigmoid(mask_ref[...])


@jax.jit
def apply_feat_mask(feat, feat_mask):
    n, f = feat.shape
    return pl.pallas_call(
        _mask_kernel,
        out_shape=jax.ShapeDtypeStruct((n, f), jnp.float32),
        in_specs=[pl.BlockSpec((n, f), lambda: (0, 0)),
                  pl.BlockSpec((n, f), lambda: (0, 0))],
        out_specs=pl.BlockSpec((n, f), lambda: (0, 0)),
    )(feat, feat_mask)


# ---------------------------------------------------------------------------
# Module wrapper (parameter setup only; forward is the fused jitted kernel).
# ---------------------------------------------------------------------------
class ExplainModelNodeMultiFeaturePallas:
    def __init__(self, adj_w, feat, target_node, key):
        self.adj_w = adj_w                                   # (N, N)
        self.feat = feat                                     # (N, F)
        self.target_node = int(target_node)
        n, f = feat.shape
        hidden, n_classes = 32, 8

        k_mask, k_w1, k_w2 = jax.random.split(key, 3)

        # construct_feat_mask(): Parameter(N, F) ~ Normal(1.0, std),
        # std = gain('relu') * sqrt(2 / (N + F))
        std = math.sqrt(2.0) * math.sqrt(2.0 / (n + f))
        self.feat_mask = 1.0 + std * jax.random.normal(k_mask, (n, f), jnp.float32)

        # deterministic synthetic "base_model" weights (no checkpoint load)
        # TODO(synk): the original base_model is an externally trained GNN;
        # a deterministic 2-layer weighted GCN stands in for it here.
        self.w1 = jax.random.normal(k_w1, (f, hidden), jnp.float32) / math.sqrt(f)
        self.w2 = jax.random.normal(k_w2, (hidden, n_classes), jnp.float32) / math.sqrt(hidden)

        # Constants precomputed ONCE (feat, adj_w, w1, target_node are fixed):
        #   P   = A @ feat @ W1  -> cf branch via linearity inside the kernel
        #   a_t = A[target]      -> direct target-row operand (no iota select)
        self.p_const = self.adj_w @ (self.feat @ self.w1)                   # (N, H)
        self.a_t = self.adj_w[self.target_node:self.target_node + 1, :]    # (1, N)

    def get_masked_feat(self):
        return apply_feat_mask(self.feat, self.feat_mask)

    def forward(self):
        out = fused_forward_batched(self.adj_w, self.feat, self.p_const,
                                    self.a_t, self.w1, self.w2,
                                    self.feat_mask[None])
        return out[0, 0], out[0, 1]

    def forward_batched(self, feat_masks):
        """Evaluate B feat_mask candidates in one kernel launch."""
        return fused_forward_batched(self.adj_w, self.feat, self.p_const,
                                     self.a_t, self.w1, self.w2, feat_masks)


# ---------------------------------------------------------------------------
# Pure-JAX reference (for a sanity check only).
# ---------------------------------------------------------------------------
def _reference_forward(adj_w, feat, feat_mask, w1, w2, target_node):
    masked = feat * jax.nn.sigmoid(feat_mask)

    def gcn(x):
        h = jnp.maximum(adj_w @ (x @ w1), 0.0)
        logits = adj_w @ (h @ w2)
        return jax.nn.softmax(logits[target_node])

    return gcn(masked), gcn(feat - masked)


def _build_graph(key, num_nodes):
    """Deterministic small weighted graph -> row-normalized dense adjacency."""
    k_a, k_w = jax.random.split(key)
    rand = jax.random.uniform(k_a, (num_nodes, num_nodes))
    a = (rand + rand.T > 1.2).astype(jnp.float32)             # symmetric edges
    a = a * (1.0 - jnp.eye(num_nodes)) + jnp.eye(num_nodes)   # self loops
    w = jax.random.uniform(k_w, (num_nodes, num_nodes), minval=0.5, maxval=1.5)
    aw = a * 0.5 * (w + w.T)                                   # edge weights
    deg = jnp.sum(aw, axis=1, keepdims=True)
    return aw / deg                                            # row-normalize


if __name__ == "__main__":
    key = jax.random.PRNGKey(0)
    k_graph, k_feat, k_model, k_batch = jax.random.split(key, 4)

    num_nodes, feat_dim = 16, 32
    n_classes = 8
    target_node = 3

    adj_w = _build_graph(k_graph, num_nodes)
    feat = jax.random.normal(k_feat, (num_nodes, feat_dim), jnp.float32)

    model = ExplainModelNodeMultiFeaturePallas(adj_w, feat, target_node, k_model)

    masked = model.get_masked_feat()
    pred1, pred2 = model.forward()
    jax.block_until_ready((masked, pred1, pred2))

    # sanity checks (single-mask forward)
    assert masked.shape == (num_nodes, feat_dim)
    assert bool(jnp.all(jnp.isfinite(masked)))
    assert pred1.shape == (n_classes,) and pred2.shape == (n_classes,)
    assert bool(jnp.all(jnp.isfinite(pred1))) and bool(jnp.all(jnp.isfinite(pred2)))
    assert abs(float(jnp.sum(pred1)) - 1.0) < 1e-3
    assert abs(float(jnp.sum(pred2)) - 1.0) < 1e-3

    ref1, ref2 = _reference_forward(adj_w, feat, model.feat_mask,
                                    model.w1, model.w2, target_node)
    assert bool(jnp.allclose(pred1, ref1, atol=2e-2, rtol=2e-2))
    assert bool(jnp.allclose(pred2, ref2, atol=2e-2, rtol=2e-2))

    # batched demo: 8 feat_mask candidates evaluated in ONE kernel launch
    B = 8
    masks = model.feat_mask[None] + 0.1 * jax.random.normal(
        k_batch, (B, num_nodes, feat_dim), jnp.float32)
    preds = model.forward_batched(masks)
    jax.block_until_ready(preds)
    assert preds.shape == (B, 2, n_classes)
    for i in range(B):
        r1, r2 = _reference_forward(adj_w, feat, masks[i],
                                    model.w1, model.w2, target_node)
        assert bool(jnp.allclose(preds[i, 0], r1, atol=2e-2, rtol=2e-2))
        assert bool(jnp.allclose(preds[i, 1], r2, atol=2e-2, rtol=2e-2))

    print("KERNEL_OK")
</pallas_src>

<mosaic_0001>
module attributes {stable_mosaic.version = 11 : i64} {
  func.func @_mask_kernel(%arg0: memref<16x32xf32, #tpu.memory_space<vmem>>, %arg1: memref<16x32xf32, #tpu.memory_space<vmem>>, %arg2: memref<16x32xf32, #tpu.memory_space<vmem>>) attributes {dimension_semantics = [], scalar_prefetch = 0 : i64, scratch_operands = 0 : i64, tpu.core_type = #tpu.core_type<tc>} {
    %c0 = arith.constant 0 : index
    %c0_0 = arith.constant 0 : index
    %0 = vector.load %arg0[%c0, %c0_0] : memref<16x32xf32, #tpu.memory_space<vmem>>, vector<16x32xf32>
    %c0_1 = arith.constant 0 : index
    %c0_2 = arith.constant 0 : index
    %1 = vector.load %arg1[%c0_1, %c0_2] : memref<16x32xf32, #tpu.memory_space<vmem>>, vector<16x32xf32>
    %2 = arith.negf %1 : vector<16x32xf32>
    %3 = math.exp %2 : vector<16x32xf32>
    %cst = arith.constant 1.000000e+00 : f32
    %4 = vector.broadcast %cst : f32 to vector<16x32xf32>
    %5 = arith.addf %4, %3 : vector<16x32xf32>
    %6 = arith.divf %4, %5 : vector<16x32xf32>
    %7 = arith.mulf %0, %6 : vector<16x32xf32>
    %c0_3 = arith.constant 0 : index
    %c0_4 = arith.constant 0 : index
    %8 = vector.load %arg2[%c0_3, %c0_4] : memref<16x32xf32, #tpu.memory_space<vmem>>, vector<16x32xf32>
    tpu.vector_store %arg2[%c0_3, %c0_4], %7 {strides = array<i32>} : memref<16x32xf32, #tpu.memory_space<vmem>>, vector<16x32xf32>,
    return
  }
}

</mosaic_0001>

<llo_original>
// kernel: apply_feat_mask.1
$region0: #{apply_feat_mask.1}
  #allocation0 [shape = 'u32[]', space=smem, size = 0x4, offset = 0x4, fixed_abs, tag = 'smem constant byte address 0x4 - core index']
  #allocation1 [shape = 'u32[72,128]{1,0:T(1,128)}', space=vmem, size = 0x9000, scoped, tag = 'internal scratch']
  %s0 = inlined_call_operand.hbm [shape: f32[16,32], index: 0, kind: input, shape index: {}]
  %s1 = inlined_call_operand.hbm [shape: f32[16,32], index: 1, kind: input, shape index: {}]
  %s2 = inlined_call_operand.hbm [shape: f32[16,32], index: 2, kind: output, shape index: {}]
  %s3 = sld [smem:[#allocation0]]
  $region26: #{apply_feat_mask.1} parent=0
    _
  %s5 = ssub.s32 1, %s3
  %s6 = scalar_select 0, %s5, %s3
  $region1: #{apply_feat_mask.1} parent=0
    #allocation2 [shape = 'u8[8192]{0}', space=vmem, size = 0x2000, scoped, tag = 'input window, operand 0, single buffered']
    #allocation3 [shape = 's32[1]{0}', space=sflag, size = 0x4, scoped, tag = 'scoped memory for apply_feat_mask.1']
    #allocation4 [shape = 's32[1]{0}', space=sflag, size = 0x4, scoped, tag = 'scoped memory for apply_feat_mask.1']
    #allocation5 [shape = 'u8[8192]{0}', space=vmem, size = 0x2000, scoped, tag = 'input window, operand 1, single buffered']
    #allocation6 [shape = 's32[1]{0}', space=sflag, size = 0x4, scoped, tag = 'scoped memory for apply_feat_mask.1']
    #allocation7 [shape = 'u8[8192]{0}', space=vmem, size = 0x2000, scoped, tag = 'output window, operand 0, single buffered']
    %7 = vsyncpa [#allocation3], 0
    %8 = vsyncpa [#allocation6], 0
    %9 = vsyncpa [#allocation4], 0
    // Predicated region
    $region2: #{apply_feat_mask.1} parent=1 // pred_check
      _
    $region3: #{apply_feat_mask.1} parent=1 // pred_check_branch
      %11 = sbr.rel (0) target = $region5
    $region4: #{apply_feat_mask.1} parent=1 // pred_region
      %13 = vsyncadd [#allocation3], 0
      %s14 = sshll.u32 %s0, 4
      %s15 = int_to_ptr.hbm [resolvable:$true] %s14
      %s16 = sshll.u32 [#allocation2], 4
      %s17 = int_to_ptr.vmem [resolvable:$true] %s16
      %22 = dma.hbm_to_vmem [thread:$0]  %s15, 256, %s17, [#allocation3], 128, 128, 8
    $region5: #{apply_feat_mask.1} parent=1 // pred_fallthru
      _
    // Predicated region
    $region6: #{apply_feat_mask.1} parent=1 // pred_check
      _
    $region7: #{apply_feat_mask.1} parent=1 // pred_check_branch
      %24 = sbr.rel (0) target = $region9
    $region8: #{apply_feat_mask.1} parent=1 // pred_region
      %26 = vsyncadd [#allocation6], 0
      %s27 = sshll.u32 %s1, 4
      %s28 = int_to_ptr.hbm [resolvable:$true] %s27
      %s29 = sshll.u32 [#allocation5], 4
      %s30 = int_to_ptr.vmem [resolvable:$true] %s29
      %35 = dma.hbm_to_vmem [thread:$0]  %s28, 256, %s30, [#allocation6], 128, 128, 8
    $region9: #{apply_feat_mask.1} parent=1 // pred_fallthru
      _
    // Predicated region
    $region10: #{apply_feat_mask.1} parent=1 // pred_check
      _
    $region11: #{apply_feat_mask.1} parent=1 // pred_check_branch
      %37 = sbr.rel (0) target = $region13
    $region12: #{apply_feat_mask.1} parent=1 // pred_region
      %39 = dma.done [#allocation3], 256
    $region13: #{apply_feat_mask.1} parent=1 // pred_fallthru
      _
    // Predicated region
    $region14: #{apply_feat_mask.1} parent=1 // pred_check
      _
    $region15: #{apply_feat_mask.1} parent=1 // pred_check_branch
      %41 = sbr.rel (0) target = $region17
    $region16: #{apply_feat_mask.1} parent=1 // pred_region
      %43 = dma.done [#allocation6], 256
    $region17: #{apply_feat_mask.1} parent=1 // pred_fallthru
      _
    %v44 = vld [vmem:[#allocation2] sm:$0xff]
    %v45 = vld [vmem:[#allocation2 + $0x8] sm:$0xff]
    %v46 = vld [vmem:[#allocation5] sm:$0xff]
    %v47 = vld [vmem:[#allocation5 + $0x8] sm:$0xff]
    %v48 = vxor.u32 %v46, 2147483648
    %v49 = vxor.u32 %v47, 2147483648
    %v50 = vmul.f32 %v48, 1.442695
    %v51 = vpow.pop %v50
    %v52 = vmul.f32 %v49, 1.442695
    %v53 = vpow.pop %v52
    %v54 = vadd.f32 %v51, 1.0
    %v55 = vadd.f32 %v53, 1.0
    %v56 = vrcp.pop %v54
    %v57 = vmul.f32 %v54, %v56
    %v58 = vsub.f32 1.0, %v57
    %v59 = vmul.f32 %v56, %v58
    %v60 = vadd.f32 %v56, %v59
    %vm61 = vweird.f32 %v54
    %vm62 = vweird.f32 %v56
    %vm63 = vmor %vm61, %vm62
    %v64 = vsel %vm63, %v56, %v60
    %v65 = vand.u32 2147483647, %v54
    %vm66 = vcmp.eq.f32.partialorder %v65, 8.507059e+37
    %v67 = vand.u32 %v54, 2147483648
    %v68 = vor.u32 1.1754944e-38, %v67
    %v69 = vsel %vm66, %v68, %v64
    %v70 = vmul.f32 1.0, %v69
    %v71 = vrcp.pop %v55
    %v72 = vmul.f32 %v55, %v71
    %v73 = vsub.f32 1.0, %v72
    %v74 = vmul.f32 %v71, %v73
    %v75 = vadd.f32 %v71, %v74
    %vm76 = vweird.f32 %v55
    %vm77 = vweird.f32 %v71
    %vm78 = vmor %vm76, %vm77
    %v79 = vsel %vm78, %v71, %v75
    %v80 = vand.u32 2147483647, %v55
    %vm81 = vcmp.eq.f32.partialorder %v80, 8.507059e+37
    %v82 = vand.u32 %v55, 2147483648
    %v83 = vor.u32 1.1754944e-38, %v82
    %v84 = vsel %vm81, %v83, %v79
    %v85 = vmul.f32 1.0, %v84
    %v86 = vmul.f32 %v44, %v70
    %v87 = vmul.f32 %v45, %v85
    %vm88 = vcmask 261120
    %89 = vst.msk [vmem:[#allocation7] sm:$0xff] %vm88, %v86
    %90 = vst.msk [vmem:[#allocation7 + $0x8] sm:$0xff] %vm88, %v87
    // Predicated region
    $region18: #{apply_feat_mask.1} parent=1 // pred_check
      _
    $region19: #{apply_feat_mask.1} parent=1 // pred_check_branch
      %92 = sbr.rel (0) target = $region21
    $region20: #{apply_feat_mask.1} parent=1 // pred_region
      %94 = vsyncadd [#allocation4], 0
      %s95 = sshll.u32 [#allocation7], 4
      %s96 = int_to_ptr.vmem [resolvable:$true] %s95
      %s97 = sshll.u32 %s2, 4
      %s98 = int_to_ptr.hbm [resolvable:$true] %s97
      %103 = dma.vmem_to_hbm [thread:$0]  %s96, 256, %s98, [#allocation4], 128, 128, 8
    $region21: #{apply_feat_mask.1} parent=1 // pred_fallthru
      _
    // Predicated region
    $region22: #{apply_feat_mask.1} parent=1 // pred_check
      _
    $region23: #{apply_feat_mask.1} parent=1 // pred_check_branch
      %105 = sbr.rel (0) target = $region25
    $region24: #{apply_feat_mask.1} parent=1 // pred_region
      %107 = dma.done [#allocation4], 256
    $region25: #{apply_feat_mask.1} parent=1 // pred_fallthru
      _
    %108 = vsyncpa [#allocation3], 1
    %109 = vsyncpa [#allocation6], 1
    %110 = vsyncpa [#allocation4], 1

</llo_original>
